<compile_context>
chip_gen: v5e
topology: v5e:2x2
jax: 0.10.0
libtpu: 0.0.40
codegen_flags: <defaults>
</compile_context>

<pallas_src>
import jax
import jax.numpy as jnp
from jax import lax
from jax.experimental import pallas as pl
from jax.experimental.pallas import tpu as pltpu


def _round_up(x, m):
    return (x + m - 1) // m * m


# --------------------------- one-hot / MXU path ------------------------------
# Used while the table streams comfortably through VMEM (per-step weight tile is
# (D, tv) double-buffered, well under the 32 MiB scoped default on all chips).

def _onehot_lookup_kernel(idx_ref, w_ref, out_ref):
    # idx_ref: (1, TM) int32  -- lane-major tile of the flattened indices
    # w_ref:   (D, TV) f32    -- V-tile of the (out_dim, voc_sz) table
    # out_ref: (D, TM) f32    -- lane-dense output tile, resident across the V axis
    k = pl.program_id(1)

    @pl.when(k == 0)
    def _():
        out_ref[...] = jnp.zeros_like(out_ref)

    idx = idx_ref[...]                      # (1, TM)
    tv = w_ref.shape[1]
    tm = idx.shape[1]
    # Global vocab ids covered by this V tile, laid out over sublanes.
    rows = k * tv + lax.broadcasted_iota(jnp.int32, (tv, tm), 0)
    onehot = (rows == idx).astype(w_ref.dtype)           # (TV, TM)
    # (D, TV) x (TV, TM) -> (D, TM) on the MXU, f32 accumulate (bit-exact lookup).
    out_ref[...] += lax.dot_general(
        w_ref[...], onehot,
        dimension_numbers=(((1,), (0,)), ((), ())),
        preferred_element_type=jnp.float32,
    )


def _lookup_onehot(idx_flat, weight, *, tm=256, tv=512):
    d, v = weight.shape
    m = idx_flat.shape[0]

    m_pad = _round_up(max(m, 1), tm)
    v_pad = _round_up(v, 128)
    tv = min(tv, v_pad)
    if v_pad % tv:
        tv = 128                            # v_pad is always a multiple of 128

    # Lane-major indices; pad with -1 (matches no vocab row -> zeros, sliced off).
    idx_pad = jnp.full((1, m_pad), -1, dtype=jnp.int32).at[0, :m].set(idx_flat)
    # Zero-pad the vocab axis up to a multiple of the V tile (one-time param prep).
    w = weight.astype(jnp.float32)
    if v_pad != v:
        w = jnp.zeros((d, v_pad), jnp.float32).at[:, :v].set(w)

    out = pl.pallas_call(
        _onehot_lookup_kernel,
        out_shape=jax.ShapeDtypeStruct((d, m_pad), jnp.float32),
        grid_spec=pltpu.PrefetchScalarGridSpec(
            num_scalar_prefetch=0,
            grid=(m_pad // tm, v_pad // tv),            # reduction (V) axis last
            in_specs=[
                pl.BlockSpec((1, tm), lambda i, k: (0, i)),   # indices tile
                pl.BlockSpec((d, tv), lambda i, k: (0, k)),   # weight V-tile
            ],
            out_specs=pl.BlockSpec((d, tm), lambda i, k: (0, i)),
        ),
        compiler_params=pltpu.CompilerParams(
            # M axis independent -> megacore sharding on v7x; V axis is a reduction.
            dimension_semantics=("parallel", "arbitrary")),
    )(idx_pad, w)
    return out[:, :m]                                   # (D, M)


# ------------------------- DMA row-gather path --------------------------------
# Large tables: never hold the table in VMEM; each index becomes one contiguous
# row DMA from a (voc_sz, out_dim) view of the table, driven by scalar-prefetched
# indices feeding the BlockSpec index_map (pl.Element row gather).

def _gather_row_kernel(ids_ref, row_ref, out_ref):
    # row_ref: (1, D) gathered row; the row selection happens in the index_map.
    del ids_ref
    out_ref[...] = row_ref[...]


def _lookup_gather(idx_flat, weight):
    d, v = weight.shape
    m = idx_flat.shape[0]
    # Rows contiguous by vocab id so each lookup is a single contiguous DMA.
    # TODO(synk): store the embedding table as (voc_sz, out_dim) upfront to avoid
    # this one-time transpose of a large table.
    w_vd = weight.astype(jnp.float32).T                  # (V, D)
    out = pl.pallas_call(
        _gather_row_kernel,
        out_shape=jax.ShapeDtypeStruct((m, d), jnp.float32),
        grid_spec=pltpu.PrefetchScalarGridSpec(
            num_scalar_prefetch=1,
            grid=(m,),
            in_specs=[pl.BlockSpec((pl.Element(1), d),
                                   lambda i, ids: (ids[i], 0))],
            out_specs=pl.BlockSpec((1, d), lambda i, ids: (i, 0)),
        ),
        compiler_params=pltpu.CompilerParams(
            dimension_semantics=("parallel",)),
    )(idx_flat, w_vd)
    # (M, D) -> (D, M); unavoidable for the row-gather layout.
    return out.T


# ------------------------------- wrapper ---------------------------------------

_ONE_HOT_TABLE_BYTES_MAX = 8 * 1024 * 1024   # conservative vs v7x's 64 MiB VMEM


@jax.jit
def lookup_table_forward(indices, weight):
    """indices: int array (any shape); weight: (out_dim, voc_sz) float32.

    Returns np.squeeze(weight[:, indices]) as float32, matching the PyTorch module.
    """
    d, v = weight.shape
    in_shape = indices.shape
    idx_flat = indices.reshape(-1).astype(jnp.int32)     # row-major flatten
    if d * v * 4 > _ONE_HOT_TABLE_BYTES_MAX:
        out_dm = _lookup_gather(idx_flat, weight)        # (D, M)
    else:
        out_dm = _lookup_onehot(idx_flat, weight)        # (D, M)
    # Embedding dim already leads -> this reshape is free (no transpose/moveaxis).
    out = out_dm.reshape((d,) + in_shape)
    return jnp.squeeze(out)


if __name__ == "__main__":
    voc_sz = 32
    out_dim = 32
    B, N = 2, 8

    key = jax.random.PRNGKey(0)
    k_w, k_idx = jax.random.split(key)

    # Deterministic init matching 0.1 * standard_normal((out_dim, voc_sz))
    weight = 0.1 * jax.random.normal(k_w, (out_dim, voc_sz), dtype=jnp.float32)
    indices = jax.random.randint(k_idx, (B, N), 0, voc_sz, dtype=jnp.int32)

    out = lookup_table_forward(indices, weight)
    out = jax.block_until_ready(out)

    # Reference: output[d, b, n] = weight[d, indices[b, n]], then squeeze.
    ref = jnp.squeeze(weight[:, indices]).astype(jnp.float32)
    assert out.shape == ref.shape, (out.shape, ref.shape)
    assert jnp.allclose(out, ref, atol=1e-6), "mismatch vs reference"

    print("KERNEL_OK")
</pallas_src>

<mosaic_0001>
module attributes {stable_mosaic.version = 11 : i64} {
  func.func @_onehot_lookup_kernel(%arg0: i32, %arg1: i32, %arg2: memref<1x256xi32, #tpu.memory_space<vmem>>, %arg3: memref<32x128xf32, #tpu.memory_space<vmem>>, %arg4: memref<32x256xf32, #tpu.memory_space<vmem>>) attributes {dimension_semantics = [#tpu.dimension_semantics<parallel>, #tpu.dimension_semantics<arbitrary>], iteration_bounds = array<i64: 1, 1>, scalar_prefetch = 0 : i64, scratch_operands = 0 : i64, tpu.core_type = #tpu.core_type<tc>, window_params = [{transform_indices = @transform_0, window_bounds = array<i64: 1, 256>}, {transform_indices = @transform_1, window_bounds = array<i64: 32, 128>}, {transform_indices = @transform_2, window_bounds = array<i64: 32, 256>}]} {
    %c0_i32 = arith.constant 0 : i32
    %0 = arith.cmpi eq, %arg1, %c0_i32 : i32
    %1 = arith.extui %0 : i1 to i32
    %c0_i32_0 = arith.constant 0 : i32
    %2 = arith.cmpi ne, %1, %c0_i32_0 : i32
    scf.if %2 {
      %cst_8 = arith.constant 0.000000e+00 : f32
      %17 = vector.broadcast %cst_8 : f32 to vector<32x256xf32>
      %c0_9 = arith.constant 0 : index
      %c0_10 = arith.constant 0 : index
      %18 = vector.load %arg4[%c0_9, %c0_10] : memref<32x256xf32, #tpu.memory_space<vmem>>, vector<32x256xf32>
      tpu.vector_store %arg4[%c0_9, %c0_10], %17 {strides = array<i32>} : memref<32x256xf32, #tpu.memory_space<vmem>>, vector<32x256xf32>,
    } else {
    }
    %c0 = arith.constant 0 : index
    %c0_1 = arith.constant 0 : index
    %3 = vector.load %arg2[%c0, %c0_1] : memref<1x256xi32, #tpu.memory_space<vmem>>, vector<1x256xi32>
    %c128_i32 = arith.constant 128 : i32
    %4 = arith.muli %arg1, %c128_i32 : i32
    %5 = tpu.iota {dimensions = array<i32: 0>} : vector<128x256xi32>
    %6 = vector.broadcast %4 : i32 to vector<128x256xi32>
    %7 = arith.addi %6, %5 : vector<128x256xi32>
    %8 = vector.broadcast %3 : vector<1x256xi32> to vector<128x256xi32>
    %9 = arith.cmpi eq, %7, %8 : vector<128x256xi32>
    %10 = arith.extui %9 : vector<128x256xi1> to vector<128x256xi32>
    %11 = arith.sitofp %10 : vector<128x256xi32> to vector<128x256xf32>
    %c0_2 = arith.constant 0 : index
    %c0_3 = arith.constant 0 : index
    %12 = vector.load %arg4[%c0_2, %c0_3] : memref<32x256xf32, #tpu.memory_space<vmem>>, vector<32x256xf32>
    %c0_4 = arith.constant 0 : index
    %c0_5 = arith.constant 0 : index
    %13 = vector.load %arg3[%c0_4, %c0_5] : memref<32x128xf32, #tpu.memory_space<vmem>>, vector<32x128xf32>
    %cst = arith.constant dense<0.000000e+00> : vector<32x256xf32>
    %14 = tpu.matmul %13, %11, %cst {dimension_numbers = #tpu.dot_dimension_numbers<[1], [0], [0], [1], [0, 0, 1, 1], [], []>} : vector<32x128xf32>, vector<128x256xf32>, vector<32x256xf32> -> vector<32x256xf32>
    %15 = arith.addf %12, %14 : vector<32x256xf32>
    %c0_6 = arith.constant 0 : index
    %c0_7 = arith.constant 0 : index
    %16 = vector.load %arg4[%c0_6, %c0_7] : memref<32x256xf32, #tpu.memory_space<vmem>>, vector<32x256xf32>
    tpu.vector_store %arg4[%c0_6, %c0_7], %15 {strides = array<i32>} : memref<32x256xf32, #tpu.memory_space<vmem>>, vector<32x256xf32>,
    return
  }
  func.func @transform_0(%arg0: i32, %arg1: i32) -> (i32, i32) {
    %c0_i32 = arith.constant 0 : i32
    %c0_i32_0 = arith.constant 0 : i32
    return %c0_i32, %arg0 : i32, i32
  }
  func.func @transform_1(%arg0: i32, %arg1: i32) -> (i32, i32) {
    %c0_i32 = arith.constant 0 : i32
    %c0_i32_0 = arith.constant 0 : i32
    return %c0_i32, %arg1 : i32, i32
  }
  func.func @transform_2(%arg0: i32, %arg1: i32) -> (i32, i32) {
    %c0_i32 = arith.constant 0 : i32
    %c0_i32_0 = arith.constant 0 : i32
    return %c0_i32, %arg0 : i32, i32
  }
}

</mosaic_0001>

<llo_original>
// kernel: lookup_table_forward.1
$region0: #{lookup_table_forward.1}
  #allocation0 [shape = 'u32[]', space=smem, size = 0x4, offset = 0x4, fixed_abs, tag = 'smem constant byte address 0x4 - core index']
  #allocation1 [shape = 'u32[72,128]{1,0:T(1,128)}', space=vmem, size = 0x9000, scoped, tag = 'internal scratch']
  %s0 = inlined_call_operand.vmem [shape: s32[1,256], index: 0, kind: input, shape index: {}]
  %s1 = inlined_call_operand.vmem [shape: f32[32,128], index: 1, kind: input, shape index: {}]
  %s2 = inlined_call_operand.vmem [shape: f32[32,256], index: 2, kind: output, shape index: {}]
  %s3 = sld [smem:[#allocation0]]
  $region22: #{lookup_table_forward.1} parent=0
    _
  %s5 = ssub.s32 1, %s3
  %s6 = scalar_select 0, %s5, %s3
  // Predicated region
  $region2: #{lookup_table_forward.1} parent=0 // pred_check
    _
  $region3: #{lookup_table_forward.1} parent=0 // pred_check_branch
    %8 = sbr.rel (0) target = $region5
  $region4: #{lookup_table_forward.1} parent=0 // pred_region
    _
  $region5: #{lookup_table_forward.1} parent=0 // pred_fallthru
    _
  // Predicated region
  $region6: #{lookup_table_forward.1} parent=0 // pred_check
    _
  $region7: #{lookup_table_forward.1} parent=0 // pred_check_branch
    %10 = sbr.rel (0) target = $region9
  $region8: #{lookup_table_forward.1} parent=0 // pred_region
    _
  $region9: #{lookup_table_forward.1} parent=0 // pred_fallthru
    _
  %p11 = scmp.eq.s32.totalorder 0, 0
  // Predicated region
  $region10: #{lookup_table_forward.1} parent=0 // pred_check
    %p12 = pneg %p11
  $region11: #{lookup_table_forward.1} parent=0 // pred_check_branch
    %14 = sbr.rel (%p12) target = $region13
  $region12: #{lookup_table_forward.1} parent=0 // pred_region
    %15 = vst [vmem:[%s2] sm:$0xff] 0.0
    %16 = vst [vmem:[%s2 + $0x8] sm:$0xff] 0.0
    %17 = vst [vmem:[%s2 + $0x10] sm:$0xff] 0.0
    %18 = vst [vmem:[%s2 + $0x18] sm:$0xff] 0.0
    %19 = vst [vmem:[%s2 + $0x20] sm:$0xff] 0.0
    %20 = vst [vmem:[%s2 + $0x28] sm:$0xff] 0.0
    %21 = vst [vmem:[%s2 + $0x30] sm:$0xff] 0.0
    %22 = vst [vmem:[%s2 + $0x38] sm:$0xff] 0.0
  $region13: #{lookup_table_forward.1} parent=0 // pred_fallthru
    _
  %v23 = vld [vmem:[%s0] sm:$0x3]
  %s24 = smul.u32 0, 128
  %v25 = vlaneseq
  %v26 = vshrl.u32 %v25, 7
  %v27 = vadd.s32 %v26, 8
  %v28 = vadd.s32 %v26, 16
  %v29 = vadd.s32 %v26, 24
  %v30 = vadd.s32 %v26, 32
  %v31 = vadd.s32 %v26, 40
  %v32 = vadd.s32 %v26, 48
  %v33 = vadd.s32 %v26, 56
  %v34 = vadd.s32 %v26, 64
  %v35 = vadd.s32 %v26, 72
  %v36 = vadd.s32 %v26, 80
  %v37 = vadd.s32 %v26, 88
  %v38 = vadd.s32 %v26, 96
  %v39 = vadd.s32 %v26, 104
  %v40 = vadd.s32 %v26, 112
  %v41 = vadd.s32 %v26, 120
  %v42 = vstv %s24
  %v43 = vadd.s32 %v42, %v26
  %v44 = vadd.s32 %v42, %v27
  %v45 = vadd.s32 %v42, %v28
  %v46 = vadd.s32 %v42, %v29
  %v47 = vadd.s32 %v42, %v30
  %v48 = vadd.s32 %v42, %v31
  %v49 = vadd.s32 %v42, %v32
  %v50 = vadd.s32 %v42, %v33
  %v51 = vadd.s32 %v42, %v34
  %v52 = vadd.s32 %v42, %v35
  %v53 = vadd.s32 %v42, %v36
  %v54 = vadd.s32 %v42, %v37
  %v55 = vadd.s32 %v42, %v38
  %v56 = vadd.s32 %v42, %v39
  %v57 = vadd.s32 %v42, %v40
  %v58 = vadd.s32 %v42, %v41
  %v59 = vperm.slane %v23, 0
  %v60 = vperm.slane %v23, 1
  %vm61 = vcmp.eq.s32.totalorder %v43, %v59
  %vm62 = vcmp.eq.s32.totalorder %v43, %v60
  %vm63 = vcmp.eq.s32.totalorder %v44, %v59
  %vm64 = vcmp.eq.s32.totalorder %v44, %v60
  %vm65 = vcmp.eq.s32.totalorder %v45, %v59
  %vm66 = vcmp.eq.s32.totalorder %v45, %v60
  %vm67 = vcmp.eq.s32.totalorder %v46, %v59
  %vm68 = vcmp.eq.s32.totalorder %v46, %v60
  %vm69 = vcmp.eq.s32.totalorder %v47, %v59
  %vm70 = vcmp.eq.s32.totalorder %v47, %v60
  %vm71 = vcmp.eq.s32.totalorder %v48, %v59
  %vm72 = vcmp.eq.s32.totalorder %v48, %v60
  %vm73 = vcmp.eq.s32.totalorder %v49, %v59
  %vm74 = vcmp.eq.s32.totalorder %v49, %v60
  %vm75 = vcmp.eq.s32.totalorder %v50, %v59
  %vm76 = vcmp.eq.s32.totalorder %v50, %v60
  %vm77 = vcmp.eq.s32.totalorder %v51, %v59
  %vm78 = vcmp.eq.s32.totalorder %v51, %v60
  %vm79 = vcmp.eq.s32.totalorder %v52, %v59
  %vm80 = vcmp.eq.s32.totalorder %v52, %v60
  %vm81 = vcmp.eq.s32.totalorder %v53, %v59
  %vm82 = vcmp.eq.s32.totalorder %v53, %v60
  %vm83 = vcmp.eq.s32.totalorder %v54, %v59
  %vm84 = vcmp.eq.s32.totalorder %v54, %v60
  %vm85 = vcmp.eq.s32.totalorder %v55, %v59
  %vm86 = vcmp.eq.s32.totalorder %v55, %v60
  %vm87 = vcmp.eq.s32.totalorder %v56, %v59
  %vm88 = vcmp.eq.s32.totalorder %v56, %v60
  %vm89 = vcmp.eq.s32.totalorder %v57, %v59
  %vm90 = vcmp.eq.s32.totalorder %v57, %v60
  %vm91 = vcmp.eq.s32.totalorder %v58, %v59
  %vm92 = vcmp.eq.s32.totalorder %v58, %v60
  %v93 = vsel %vm61, 1, 0
  %v94 = vsel %vm62, 1, 0
  %v95 = vsel %vm63, 1, 0
  %v96 = vsel %vm64, 1, 0
  %v97 = vsel %vm65, 1, 0
  %v98 = vsel %vm66, 1, 0
  %v99 = vsel %vm67, 1, 0
  %v100 = vsel %vm68, 1, 0
  %v101 = vsel %vm69, 1, 0
  %v102 = vsel %vm70, 1, 0
  %v103 = vsel %vm71, 1, 0
  %v104 = vsel %vm72, 1, 0
  %v105 = vsel %vm73, 1, 0
  %v106 = vsel %vm74, 1, 0
  %v107 = vsel %vm75, 1, 0
  %v108 = vsel %vm76, 1, 0
  %v109 = vsel %vm77, 1, 0
  %v110 = vsel %vm78, 1, 0
  %v111 = vsel %vm79, 1, 0
  %v112 = vsel %vm80, 1, 0
  %v113 = vsel %vm81, 1, 0
  %v114 = vsel %vm82, 1, 0
  %v115 = vsel %vm83, 1, 0
  %v116 = vsel %vm84, 1, 0
  %v117 = vsel %vm85, 1, 0
  %v118 = vsel %vm86, 1, 0
  %v119 = vsel %vm87, 1, 0
  %v120 = vsel %vm88, 1, 0
  %v121 = vsel %vm89, 1, 0
  %v122 = vsel %vm90, 1, 0
  %v123 = vsel %vm91, 1, 0
  %v124 = vsel %vm92, 1, 0
  %v125 = vcvt.s32.f32 %v93
  %v126 = vcvt.s32.f32 %v94
  %v127 = vcvt.s32.f32 %v95
  %v128 = vcvt.s32.f32 %v96
  %v129 = vcvt.s32.f32 %v97
  %v130 = vcvt.s32.f32 %v98
  %v131 = vcvt.s32.f32 %v99
  %v132 = vcvt.s32.f32 %v100
  %v133 = vcvt.s32.f32 %v101
  %v134 = vcvt.s32.f32 %v102
  %v135 = vcvt.s32.f32 %v103
  %v136 = vcvt.s32.f32 %v104
  %v137 = vcvt.s32.f32 %v105
  %v138 = vcvt.s32.f32 %v106
  %v139 = vcvt.s32.f32 %v107
  %v140 = vcvt.s32.f32 %v108
  %v141 = vcvt.s32.f32 %v109
  %v142 = vcvt.s32.f32 %v110
  %v143 = vcvt.s32.f32 %v111
  %v144 = vcvt.s32.f32 %v112
  %v145 = vcvt.s32.f32 %v113
  %v146 = vcvt.s32.f32 %v114
  %v147 = vcvt.s32.f32 %v115
  %v148 = vcvt.s32.f32 %v116
  %v149 = vcvt.s32.f32 %v117
  %v150 = vcvt.s32.f32 %v118
  %v151 = vcvt.s32.f32 %v119
  %v152 = vcvt.s32.f32 %v120
  %v153 = vcvt.s32.f32 %v121
  %v154 = vcvt.s32.f32 %v122
  %v155 = vcvt.s32.f32 %v123
  %v156 = vcvt.s32.f32 %v124
  %v157 = vld [vmem:[%s2] sm:$0xff]
  %v158 = vld [vmem:[%s2 + $0x8] sm:$0xff]
  %v159 = vld [vmem:[%s2 + $0x10] sm:$0xff]
  %v160 = vld [vmem:[%s2 + $0x18] sm:$0xff]
  %v161 = vld [vmem:[%s2 + $0x20] sm:$0xff]
  %v162 = vld [vmem:[%s2 + $0x28] sm:$0xff]
  %v163 = vld [vmem:[%s2 + $0x30] sm:$0xff]
  %v164 = vld [vmem:[%s2 + $0x38] sm:$0xff]
  %v165 = vld [vmem:[%s1] sm:$0xff]
  %v166 = vld [vmem:[%s1 + $0x8] sm:$0xff]
  %v167 = vld [vmem:[%s1 + $0x10] sm:$0xff]
  %v168 = vld [vmem:[%s1 + $0x18] sm:$0xff]
  %169 = vmatpush.msra.mxu0 %v155
  %170 = vmatpush.msra.mxu0 %v153
  %171 = vmatpush.msra.mxu0 %v151
  %172 = vmatpush.msra.mxu0 %v149
  %173 = vmatpush.msra.mxu0 %v147
  %174 = vmatpush.msra.mxu0 %v145
  %175 = vmatpush.msra.mxu0 %v143
  %176 = vmatpush.msra.mxu0 %v141
  %177 = vmatpush.msra.mxu0 %v139
  %178 = vmatpush.msra.mxu0 %v137
  %179 = vmatpush.msra.mxu0 %v135
  %180 = vmatpush.msra.mxu0 %v133
  %181 = vmatpush.msra.mxu0 %v131
  %182 = vmatpush.msra.mxu0 %v129
  %183 = vmatpush.msra.mxu0 %v127
  %184 = vmatpush.msra.mxu0 %v125
  %185 = vmatmul.f32.gmra.mxu0 %v165
  %v186 = vpop.f32.mrf.mxu0
  %v187 = vadd.f32 0.0, %v186
  %188 = vmatmul.f32.gmra.mxu0 %v166
  %v189 = vpop.f32.mrf.mxu0
  %v190 = vadd.f32 0.0, %v189
  %191 = vmatmul.f32.gmra.mxu0 %v167
  %v192 = vpop.f32.mrf.mxu0
  %v193 = vadd.f32 0.0, %v192
  %194 = vmatmul.f32.gmra.mxu0 %v168
  %v195 = vpop.f32.mrf.mxu0
  %v196 = vadd.f32 0.0, %v195
  %197 = vdwg.mxu0
  %198 = vmatpush.msra.mxu0 %v156
  %199 = vmatpush.msra.mxu0 %v154
  %200 = vmatpush.msra.mxu0 %v152
  %201 = vmatpush.msra.mxu0 %v150
  %202 = vmatpush.msra.mxu0 %v148
  %203 = vmatpush.msra.mxu0 %v146
  %204 = vmatpush.msra.mxu0 %v144
  %205 = vmatpush.msra.mxu0 %v142
  %206 = vmatpush.msra.mxu0 %v140
  %207 = vmatpush.msra.mxu0 %v138
  %208 = vmatpush.msra.mxu0 %v136
  %209 = vmatpush.msra.mxu0 %v134
  %210 = vmatpush.msra.mxu0 %v132
  %211 = vmatpush.msra.mxu0 %v130
  %212 = vmatpush.msra.mxu0 %v128
  %213 = vmatpush.msra.mxu0 %v126
  %214 = vmatmul.f32.gmra.mxu0 %v165
  %v215 = vpop.f32.mrf.mxu0
  %v216 = vadd.f32 0.0, %v215
  %217 = vmatmul.f32.gmra.mxu0 %v166
  %v218 = vpop.f32.mrf.mxu0
  %v219 = vadd.f32 0.0, %v218
  %220 = vmatmul.f32.gmra.mxu0 %v167
  %v221 = vpop.f32.mrf.mxu0
  %v222 = vadd.f32 0.0, %v221
  %223 = vmatmul.f32.gmra.mxu0 %v168
  %v224 = vpop.f32.mrf.mxu0
  %v225 = vadd.f32 0.0, %v224
  %226 = vdwg.mxu0
  %v227 = vadd.f32 %v157, %v187
  %v228 = vadd.f32 %v158, %v216
  %v229 = vadd.f32 %v159, %v190
  %v230 = vadd.f32 %v160, %v219
  %v231 = vadd.f32 %v161, %v193
  %v232 = vadd.f32 %v162, %v222
  %v233 = vadd.f32 %v163, %v196
  %v234 = vadd.f32 %v164, %v225
  %235 = vst [vmem:[%s2] sm:$0xff] %v227
  %236 = vst [vmem:[%s2 + $0x8] sm:$0xff] %v228
  %237 = vst [vmem:[%s2 + $0x10] sm:$0xff] %v229
  %238 = vst [vmem:[%s2 + $0x18] sm:$0xff] %v230
  %239 = vst [vmem:[%s2 + $0x20] sm:$0xff] %v231
  %240 = vst [vmem:[%s2 + $0x28] sm:$0xff] %v232
  %241 = vst [vmem:[%s2 + $0x30] sm:$0xff] %v233
  %242 = vst [vmem:[%s2 + $0x38] sm:$0xff] %v234
  // Predicated region
  $region14: #{lookup_table_forward.1} parent=0 // pred_check
    _
  $region15: #{lookup_table_forward.1} parent=0 // pred_check_branch
    %244 = sbr.rel (0) target = $region17
  $region16: #{lookup_table_forward.1} parent=0 // pred_region
    _
  $region17: #{lookup_table_forward.1} parent=0 // pred_fallthru
    _
  // Predicated region
  $region18: #{lookup_table_forward.1} parent=0 // pred_check
    _
  $region19: #{lookup_table_forward.1} parent=0 // pred_check_branch
    %246 = sbr.rel (0) target = $region21
  $region20: #{lookup_table_forward.1} parent=0 // pred_region
    _
  $region21: #{lookup_table_forward.1} parent=0 // pred_fallthru
    _

</llo_original>
